<compile_context>
chip_gen: v5e
topology: v5e:2x2
jax: 0.10.0
libtpu: 0.0.40
codegen_flags: <defaults>
</compile_context>

<pallas_src>
import math
import jax
import jax.numpy as jnp
from jax import lax
from jax.experimental import pallas as pl
from jax.experimental.pallas import tpu as pltpu

_BN_EPS = 1e-5


def _round_up(x, m):
    return ((x + m - 1) // m) * m


# ----------------------------------------------------------------------------
# Fused kernel: all rank-2 blocks + output head in one VMEM-resident call.
#   x_ref    : (B, in0_pad)
#   w1_ref   : (nb, max_in, 8)   cols 0/1 = w1, w1_2 ; cols 2..7 == 0
#   p_ref    : (nb, 8, max_out)  rows 0..4 = w2ᵀ, w2_2ᵀ, bias, gamma, beta ; rows 5..7 == 0
#   head_ref : (head_in + 8, c_pad)  rows :head_in = W_headᵀ, row head_in = b_head
#   out_ref  : (B, sum(out_dims) + c_pad)   lane-dense output slab
# ----------------------------------------------------------------------------
def _make_fused_kernel(dims, offsets, head_in, c_pad):
    nb = len(dims)

    def kernel(x_ref, w1_ref, p_ref, head_ref, out_ref):
        h = x_ref[...]
        for i, (d_in, d_out) in enumerate(dims):
            w1 = w1_ref[i, :d_in, :]            # (d_in, 8)   static slice, zero-cost
            p = p_ref[i, :, :d_out]             # (8, d_out)

            # rank-2 linear on the MXU:
            #   t[:, 0] = h . w1 ; t[:, 1] = h . w1_2 ; t[:, 2:] == 0 exactly
            t = jnp.dot(h, w1, preferred_element_type=jnp.float32)       # (B, 8)
            # rows 2..4 of p (bias/gamma/beta) are multiplied by the zero cols of t.
            y = jnp.dot(t, p, preferred_element_type=jnp.float32) + p[2:3, :]
            y = jnp.maximum(y, 0.0)                                       # ReLU

            # BatchNorm1d, training mode: two-pass biased batch variance (as PyTorch).
            mean = jnp.mean(y, axis=0, keepdims=True)
            var = jnp.mean(jnp.square(y - mean), axis=0, keepdims=True)
            scale = lax.rsqrt(var + _BN_EPS) * p[3:4, :]                  # fold gamma
            h = (y - mean) * scale + p[4:5, :]                            # + beta

            out_ref[:, offsets[i]:offsets[i] + d_out] = h                 # 128-aligned

        # output head: relu(h @ W_headᵀ + b_head), lane-padded to a dense slab.
        wh = head_ref[:head_in, :]
        bh = head_ref[head_in:head_in + 1, :]
        yh = jnp.dot(h, wh, preferred_element_type=jnp.float32) + bh
        out_ref[:, offsets[nb]:offsets[nb] + c_pad] = jnp.maximum(yh, 0.0)

    return kernel


# ----------------------------------------------------------------------------
# One-time parameter packing (hoisted out of the per-call path).
# ----------------------------------------------------------------------------
def pack_params(params, *, lane=128):
    blocks = params["blocks"]
    nb = len(blocks)
    w_out = jnp.asarray(params["w_out"], jnp.float32)   # (C, head_in)
    b_out = jnp.asarray(params["b_out"], jnp.float32)   # (C,)
    num_classes, head_in = w_out.shape

    in_dims = [p["w1"].shape[1] for p in blocks]
    out_dims = [p["w2"].shape[0] for p in blocks]
    in0 = in_dims[0]
    in0_pad = _round_up(in0, lane)
    d_ins = [in0_pad] + in_dims[1:]        # kernel-side contraction widths
    max_in = max(d_ins)
    max_out = max(out_dims)

    w1_slab = jnp.zeros((nb, max_in, 8), jnp.float32)
    p_slab = jnp.zeros((nb, 8, max_out), jnp.float32)
    for i, p in enumerate(blocks):
        di, do = in_dims[i], out_dims[i]
        w1_slab = w1_slab.at[i, :di, 0].set(p["w1"][0])
        w1_slab = w1_slab.at[i, :di, 1].set(p["w1_2"][0])
        p_slab = p_slab.at[i, 0, :do].set(p["w2"][:, 0])
        p_slab = p_slab.at[i, 1, :do].set(p["w2_2"][:, 0])
        p_slab = p_slab.at[i, 2, :do].set(p["bias"])
        p_slab = p_slab.at[i, 3, :do].set(p["gamma"])
        p_slab = p_slab.at[i, 4, :do].set(p["beta"])

    c_pad = _round_up(num_classes, lane)
    head_slab = jnp.zeros((head_in + 8, c_pad), jnp.float32)
    head_slab = head_slab.at[:head_in, :num_classes].set(w_out.T)
    head_slab = head_slab.at[head_in, :num_classes].set(b_out)

    offsets, col = [], 0
    for do in out_dims:
        offsets.append(col)
        col += do
    offsets.append(col)                     # head offset
    total_out = col + c_pad

    return dict(
        w1_slab=w1_slab, p_slab=p_slab, head_slab=head_slab,
        dims=tuple(zip(d_ins, out_dims)), offsets=tuple(offsets),
        total_out=total_out, in0=in0, in0_pad=in0_pad,
        head_in=head_in, c_pad=c_pad, num_classes=num_classes,
    )


# ----------------------------------------------------------------------------
# Forward: one pallas_call, 4 input refs + 1 output slab.
# ----------------------------------------------------------------------------
def sign_mlp_forward(data, packed):
    x = jnp.asarray(data, jnp.float32)
    B = x.shape[0]
    in0, in0_pad = packed["in0"], packed["in0_pad"]
    if in0_pad > in0:
        x = jnp.pad(x, ((0, 0), (0, in0_pad - in0)))

    dims = packed["dims"]
    offsets = packed["offsets"]
    total = packed["total_out"]
    kernel = _make_fused_kernel(dims, offsets, packed["head_in"], packed["c_pad"])

    out = pl.pallas_call(
        kernel,
        out_shape=jax.ShapeDtypeStruct((B, total), jnp.float32),
        grid=(1,),
        in_specs=[
            pl.BlockSpec((B, in0_pad), lambda i: (0, 0)),
            pl.BlockSpec(packed["w1_slab"].shape, lambda i: (0, 0, 0)),
            pl.BlockSpec(packed["p_slab"].shape, lambda i: (0, 0, 0)),
            pl.BlockSpec(packed["head_slab"].shape, lambda i: (0, 0)),
        ],
        out_specs=pl.BlockSpec((B, total), lambda i: (0, 0)),
        compiler_params=pltpu.CompilerParams(dimension_semantics=("arbitrary",)),
    )(x, packed["w1_slab"], packed["p_slab"], packed["head_slab"])

    block_outs = [out[:, o:o + d_out] for (_, d_out), o in zip(dims, offsets)]
    head = out[:, offsets[-1]:offsets[-1] + packed["num_classes"]]
    # module(x.detach()) and module(x) have identical forward values, so the
    # stored `output` entries equal the chained activations.
    return head, block_outs + [head]


# ----------------------------------------------------------------------------
# Parameter construction (deterministic, mirrors the PyTorch __init__ shapes).
# ----------------------------------------------------------------------------
def _xavier_uniform(key, shape):
    fan_out, fan_in = shape  # torch convention: (out_features, in_features)
    bound = math.sqrt(6.0 / (fan_in + fan_out))
    return jax.random.uniform(key, shape, jnp.float32, -bound, bound)


def make_params(key, units, num_classes=10):
    blocks = []
    for i in range(len(units) - 1):
        inp, outp = units[i], units[i + 1]
        key, k1, k2, k3, k4 = jax.random.split(key, 5)
        blocks.append(dict(
            w1=_xavier_uniform(k1, (1, inp)),
            w2=_xavier_uniform(k2, (outp, 1)),
            w1_2=_xavier_uniform(k3, (1, inp)),
            w2_2=_xavier_uniform(k4, (outp, 1)),
            bias=jnp.full((outp,), 0.1, jnp.float32),
            gamma=jnp.ones((outp,), jnp.float32),   # BN affine weight
            beta=jnp.zeros((outp,), jnp.float32),   # BN affine bias
        ))
    key, kw, kb = jax.random.split(key, 3)
    bound = 1.0 / math.sqrt(units[-1])
    w_out = jax.random.uniform(kw, (num_classes, units[-1]), jnp.float32, -bound, bound)
    b_out = jax.random.uniform(kb, (num_classes,), jnp.float32, -bound, bound)
    return dict(blocks=blocks, w_out=w_out, b_out=b_out)


# ----------------------------------------------------------------------------
# Pure-JAX reference (faithful: full W build, two-pass BN).
# ----------------------------------------------------------------------------
def _ref_forward(data, params):
    x = data
    outs = []
    for p in params["blocks"]:
        W = p["w2"] @ p["w1"] + p["w2_2"] @ p["w1_2"]
        y = x @ W.T + p["bias"]
        y = jnp.maximum(y, 0.0)
        mean = jnp.mean(y, axis=0, keepdims=True)
        var = jnp.mean(jnp.square(y - mean), axis=0, keepdims=True)
        y = (y - mean) / jnp.sqrt(var + _BN_EPS) * p["gamma"] + p["beta"]
        x = y
        outs.append(x)
    x = jnp.maximum(x @ params["w_out"].T + params["b_out"], 0.0)
    outs.append(x)
    return x, outs


if __name__ == "__main__":
    # mnist configuration: units = [784, 512, 512, 128], 10 classes
    units = [784, 512, 512, 128]
    batch = 8

    key = jax.random.PRNGKey(0)
    key, kdata, kparam = jax.random.split(key, 3)
    data = jax.random.normal(kdata, (batch, units[0]), jnp.float32)
    params = make_params(kparam, units, num_classes=10)
    packed = pack_params(params)            # one-time packing, reused per call

    x, output = sign_mlp_forward(data, packed)
    jax.block_until_ready(x)
    jax.block_until_ready(output)

    x_ref, out_ref = _ref_forward(data, params)
    assert x.shape == (batch, 10)
    assert len(output) == len(units) - 1 + 1
    # Tolerance allows for MXU multi-pass f32 rounding (kernel) vs the XLA
    # reference's own matmul rounding, amplified by the BN normalization.
    assert jnp.allclose(x, x_ref, atol=1e-3, rtol=1e-3)
    for a, b in zip(output, out_ref):
        assert a.shape == b.shape
        assert jnp.allclose(a, b, atol=1e-3, rtol=1e-3)

    print("KERNEL_OK")
</pallas_src>

<mosaic_0001>
module attributes {stable_mosaic.version = 11 : i64} {
  func.func @kernel(%arg0: i32, %arg1: memref<8x896xf32, #tpu.memory_space<vmem>>, %arg2: memref<3x896x8xf32, #tpu.memory_space<vmem>>, %arg3: memref<3x8x512xf32, #tpu.memory_space<vmem>>, %arg4: memref<136x128xf32, #tpu.memory_space<vmem>>, %arg5: memref<8x1280xf32, #tpu.memory_space<vmem>>) attributes {dimension_semantics = [#tpu.dimension_semantics<arbitrary>], iteration_bounds = array<i64: 1>, scalar_prefetch = 0 : i64, scratch_operands = 0 : i64, tpu.core_type = #tpu.core_type<tc>, window_params = [{pipeline_mode = #tpu.pipeline_mode<synchronous>, transform_indices = @transform_0, window_bounds = array<i64: 8, 896>}, {pipeline_mode = #tpu.pipeline_mode<synchronous>, transform_indices = @transform_1, window_bounds = array<i64: 3, 896, 8>}, {pipeline_mode = #tpu.pipeline_mode<synchronous>, transform_indices = @transform_2, window_bounds = array<i64: 3, 8, 512>}, {pipeline_mode = #tpu.pipeline_mode<synchronous>, transform_indices = @transform_3, window_bounds = array<i64: 136, 128>}, {pipeline_mode = #tpu.pipeline_mode<synchronous>, transform_indices = @transform_4, window_bounds = array<i64: 8, 1280>}]} {
    %c0 = arith.constant 0 : index
    %c0_0 = arith.constant 0 : index
    %0 = vector.load %arg1[%c0, %c0_0] : memref<8x896xf32, #tpu.memory_space<vmem>>, vector<8x896xf32>
    %c0_1 = arith.constant 0 : index
    %c0_2 = arith.constant 0 : index
    %c0_3 = arith.constant 0 : index
    %1 = vector.load %arg2[%c0_1, %c0_2, %c0_3] : memref<3x896x8xf32, #tpu.memory_space<vmem>>, vector<1x896x8xf32>
    %2 = vector.shape_cast %1 : vector<1x896x8xf32> to vector<896x8xf32>
    %c0_4 = arith.constant 0 : index
    %c0_5 = arith.constant 0 : index
    %c0_6 = arith.constant 0 : index
    %3 = vector.load %arg3[%c0_4, %c0_5, %c0_6] : memref<3x8x512xf32, #tpu.memory_space<vmem>>, vector<1x8x512xf32>
    %4 = vector.shape_cast %3 : vector<1x8x512xf32> to vector<8x512xf32>
    %cst = arith.constant dense<0.000000e+00> : vector<8x8xf32>
    %5 = tpu.matmul %0, %2, %cst {dimension_numbers = #tpu.dot_dimension_numbers<[1], [0], [0], [1], [0, 0, 1, 1], [], []>} : vector<8x896xf32>, vector<896x8xf32>, vector<8x8xf32> -> vector<8x8xf32>
    %cst_7 = arith.constant dense<0.000000e+00> : vector<8x512xf32>
    %6 = tpu.matmul %5, %4, %cst_7 {dimension_numbers = #tpu.dot_dimension_numbers<[1], [0], [0], [1], [0, 0, 1, 1], [], []>} : vector<8x8xf32>, vector<8x512xf32>, vector<8x512xf32> -> vector<8x512xf32>
    %7 = vector.extract_strided_slice %4 {offsets = [2, 0], sizes = [1, 512], strides = [1, 1]} : vector<8x512xf32> to vector<1x512xf32>
    %8 = vector.broadcast %7 : vector<1x512xf32> to vector<8x512xf32>
    %9 = arith.addf %6, %8 : vector<8x512xf32>
    %cst_8 = arith.constant 0.000000e+00 : f32
    %10 = vector.broadcast %cst_8 : f32 to vector<8x512xf32>
    %11 = arith.maximumf %9, %10 : vector<8x512xf32>
    %cst_9 = arith.constant dense<0.000000e+00> : vector<512xf32>
    %12 = vector.multi_reduction <add>, %11, %cst_9 [0] : vector<8x512xf32> to vector<512xf32>
    %13 = vector.shape_cast %12 : vector<512xf32> to vector<1x512xf32>
    %cst_10 = arith.constant 8.000000e+00 : f32
    %14 = vector.broadcast %cst_10 : f32 to vector<1x512xf32>
    %15 = arith.divf %13, %14 : vector<1x512xf32>
    %16 = vector.broadcast %15 : vector<1x512xf32> to vector<8x512xf32>
    %17 = arith.subf %11, %16 : vector<8x512xf32>
    %18 = arith.mulf %17, %17 : vector<8x512xf32>
    %cst_11 = arith.constant dense<0.000000e+00> : vector<512xf32>
    %19 = vector.multi_reduction <add>, %18, %cst_11 [0] : vector<8x512xf32> to vector<512xf32>
    %20 = vector.shape_cast %19 : vector<512xf32> to vector<1x512xf32>
    %cst_12 = arith.constant 8.000000e+00 : f32
    %21 = vector.broadcast %cst_12 : f32 to vector<1x512xf32>
    %22 = arith.divf %20, %21 : vector<1x512xf32>
    %cst_13 = arith.constant 9.99999974E-6 : f32
    %23 = vector.broadcast %cst_13 : f32 to vector<1x512xf32>
    %24 = arith.addf %22, %23 : vector<1x512xf32>
    %25 = math.rsqrt %24 : vector<1x512xf32>
    %26 = vector.extract_strided_slice %4 {offsets = [3, 0], sizes = [1, 512], strides = [1, 1]} : vector<8x512xf32> to vector<1x512xf32>
    %27 = arith.mulf %25, %26 : vector<1x512xf32>
    %28 = vector.broadcast %15 : vector<1x512xf32> to vector<8x512xf32>
    %29 = arith.subf %11, %28 : vector<8x512xf32>
    %30 = vector.broadcast %27 : vector<1x512xf32> to vector<8x512xf32>
    %31 = arith.mulf %29, %30 : vector<8x512xf32>
    %32 = vector.extract_strided_slice %4 {offsets = [4, 0], sizes = [1, 512], strides = [1, 1]} : vector<8x512xf32> to vector<1x512xf32>
    %33 = vector.broadcast %32 : vector<1x512xf32> to vector<8x512xf32>
    %34 = arith.addf %31, %33 : vector<8x512xf32>
    %c0_14 = arith.constant 0 : index
    %c0_15 = arith.constant 0 : index
    %35 = vector.load %arg5[%c0_14, %c0_15] : memref<8x1280xf32, #tpu.memory_space<vmem>>, vector<8x512xf32>
    tpu.vector_store %arg5[%c0_14, %c0_15], %34 {strides = array<i32>} : memref<8x1280xf32, #tpu.memory_space<vmem>>, vector<8x512xf32>,
    %c1 = arith.constant 1 : index
    %c0_16 = arith.constant 0 : index
    %c0_17 = arith.constant 0 : index
    %36 = vector.load %arg2[%c1, %c0_16, %c0_17] : memref<3x896x8xf32, #tpu.memory_space<vmem>>, vector<1x512x8xf32>
    %37 = vector.shape_cast %36 : vector<1x512x8xf32> to vector<512x8xf32>
    %c1_18 = arith.constant 1 : index
    %c0_19 = arith.constant 0 : index
    %c0_20 = arith.constant 0 : index
    %38 = vector.load %arg3[%c1_18, %c0_19, %c0_20] : memref<3x8x512xf32, #tpu.memory_space<vmem>>, vector<1x8x512xf32>
    %39 = vector.shape_cast %38 : vector<1x8x512xf32> to vector<8x512xf32>
    %cst_21 = arith.constant dense<0.000000e+00> : vector<8x8xf32>
    %40 = tpu.matmul %34, %37, %cst_21 {dimension_numbers = #tpu.dot_dimension_numbers<[1], [0], [0], [1], [0, 0, 1, 1], [], []>} : vector<8x512xf32>, vector<512x8xf32>, vector<8x8xf32> -> vector<8x8xf32>
    %cst_22 = arith.constant dense<0.000000e+00> : vector<8x512xf32>
    %41 = tpu.matmul %40, %39, %cst_22 {dimension_numbers = #tpu.dot_dimension_numbers<[1], [0], [0], [1], [0, 0, 1, 1], [], []>} : vector<8x8xf32>, vector<8x512xf32>, vector<8x512xf32> -> vector<8x512xf32>
    %42 = vector.extract_strided_slice %39 {offsets = [2, 0], sizes = [1, 512], strides = [1, 1]} : vector<8x512xf32> to vector<1x512xf32>
    %43 = vector.broadcast %42 : vector<1x512xf32> to vector<8x512xf32>
    %44 = arith.addf %41, %43 : vector<8x512xf32>
    %cst_23 = arith.constant 0.000000e+00 : f32
    %45 = vector.broadcast %cst_23 : f32 to vector<8x512xf32>
    %46 = arith.maximumf %44, %45 : vector<8x512xf32>
    %cst_24 = arith.constant dense<0.000000e+00> : vector<512xf32>
    %47 = vector.multi_reduction <add>, %46, %cst_24 [0] : vector<8x512xf32> to vector<512xf32>
    %48 = vector.shape_cast %47 : vector<512xf32> to vector<1x512xf32>
    %cst_25 = arith.constant 8.000000e+00 : f32
    %49 = vector.broadcast %cst_25 : f32 to vector<1x512xf32>
    %50 = arith.divf %48, %49 : vector<1x512xf32>
    %51 = vector.broadcast %50 : vector<1x512xf32> to vector<8x512xf32>
    %52 = arith.subf %46, %51 : vector<8x512xf32>
    %53 = arith.mulf %52, %52 : vector<8x512xf32>
    %cst_26 = arith.constant dense<0.000000e+00> : vector<512xf32>
    %54 = vector.multi_reduction <add>, %53, %cst_26 [0] : vector<8x512xf32> to vector<512xf32>
    %55 = vector.shape_cast %54 : vector<512xf32> to vector<1x512xf32>
    %cst_27 = arith.constant 8.000000e+00 : f32
    %56 = vector.broadcast %cst_27 : f32 to vector<1x512xf32>
    %57 = arith.divf %55, %56 : vector<1x512xf32>
    %cst_28 = arith.constant 9.99999974E-6 : f32
    %58 = vector.broadcast %cst_28 : f32 to vector<1x512xf32>
    %59 = arith.addf %57, %58 : vector<1x512xf32>
    %60 = math.rsqrt %59 : vector<1x512xf32>
    %61 = vector.extract_strided_slice %39 {offsets = [3, 0], sizes = [1, 512], strides = [1, 1]} : vector<8x512xf32> to vector<1x512xf32>
    %62 = arith.mulf %60, %61 : vector<1x512xf32>
    %63 = vector.broadcast %50 : vector<1x512xf32> to vector<8x512xf32>
    %64 = arith.subf %46, %63 : vector<8x512xf32>
    %65 = vector.broadcast %62 : vector<1x512xf32> to vector<8x512xf32>
    %66 = arith.mulf %64, %65 : vector<8x512xf32>
    %67 = vector.extract_strided_slice %39 {offsets = [4, 0], sizes = [1, 512], strides = [1, 1]} : vector<8x512xf32> to vector<1x512xf32>
    %68 = vector.broadcast %67 : vector<1x512xf32> to vector<8x512xf32>
    %69 = arith.addf %66, %68 : vector<8x512xf32>
    %c0_29 = arith.constant 0 : index
    %c512 = arith.constant 512 : index
    %70 = vector.load %arg5[%c0_29, %c512] : memref<8x1280xf32, #tpu.memory_space<vmem>>, vector<8x512xf32>
    tpu.vector_store %arg5[%c0_29, %c512], %69 {strides = array<i32>} : memref<8x1280xf32, #tpu.memory_space<vmem>>, vector<8x512xf32>,
    %c2 = arith.constant 2 : index
    %c0_30 = arith.constant 0 : index
    %c0_31 = arith.constant 0 : index
    %71 = vector.load %arg2[%c2, %c0_30, %c0_31] : memref<3x896x8xf32, #tpu.memory_space<vmem>>, vector<1x512x8xf32>
    %72 = vector.shape_cast %71 : vector<1x512x8xf32> to vector<512x8xf32>
    %c2_32 = arith.constant 2 : index
    %c0_33 = arith.constant 0 : index
    %c0_34 = arith.constant 0 : index
    %73 = vector.load %arg3[%c2_32, %c0_33, %c0_34] : memref<3x8x512xf32, #tpu.memory_space<vmem>>, vector<1x8x128xf32>
    %74 = vector.shape_cast %73 : vector<1x8x128xf32> to vector<8x128xf32>
    %cst_35 = arith.constant dense<0.000000e+00> : vector<8x8xf32>
    %75 = tpu.matmul %69, %72, %cst_35 {dimension_numbers = #tpu.dot_dimension_numbers<[1], [0], [0], [1], [0, 0, 1, 1], [], []>} : vector<8x512xf32>, vector<512x8xf32>, vector<8x8xf32> -> vector<8x8xf32>
    %cst_36 = arith.constant dense<0.000000e+00> : vector<8x128xf32>
    %76 = tpu.matmul %75, %74, %cst_36 {dimension_numbers = #tpu.dot_dimension_numbers<[1], [0], [0], [1], [0, 0, 1, 1], [], []>} : vector<8x8xf32>, vector<8x128xf32>, vector<8x128xf32> -> vector<8x128xf32>
    %77 = vector.extract_strided_slice %74 {offsets = [2, 0], sizes = [1, 128], strides = [1, 1]} : vector<8x128xf32> to vector<1x128xf32>
    %78 = vector.broadcast %77 : vector<1x128xf32> to vector<8x128xf32>
    %79 = arith.addf %76, %78 : vector<8x128xf32>
    %cst_37 = arith.constant 0.000000e+00 : f32
    %80 = vector.broadcast %cst_37 : f32 to vector<8x128xf32>
    %81 = arith.maximumf %79, %80 : vector<8x128xf32>
    %cst_38 = arith.constant dense<0.000000e+00> : vector<128xf32>
    %82 = vector.multi_reduction <add>, %81, %cst_38 [0] : vector<8x128xf32> to vector<128xf32>
    %83 = vector.shape_cast %82 : vector<128xf32> to vector<1x128xf32>
    %cst_39 = arith.constant 8.000000e+00 : f32
    %84 = vector.broadcast %cst_39 : f32 to vector<1x128xf32>
    %85 = arith.divf %83, %84 : vector<1x128xf32>
    %86 = vector.broadcast %85 : vector<1x128xf32> to vector<8x128xf32>
    %87 = arith.subf %81, %86 : vector<8x128xf32>
    %88 = arith.mulf %87, %87 : vector<8x128xf32>
    %cst_40 = arith.constant dense<0.000000e+00> : vector<128xf32>
    %89 = vector.multi_reduction <add>, %88, %cst_40 [0] : vector<8x128xf32> to vector<128xf32>
    %90 = vector.shape_cast %89 : vector<128xf32> to vector<1x128xf32>
    %cst_41 = arith.constant 8.000000e+00 : f32
    %91 = vector.broadcast %cst_41 : f32 to vector<1x128xf32>
    %92 = arith.divf %90, %91 : vector<1x128xf32>
    %cst_42 = arith.constant 9.99999974E-6 : f32
    %93 = vector.broadcast %cst_42 : f32 to vector<1x128xf32>
    %94 = arith.addf %92, %93 : vector<1x128xf32>
    %95 = math.rsqrt %94 : vector<1x128xf32>
    %96 = vector.extract_strided_slice %74 {offsets = [3, 0], sizes = [1, 128], strides = [1, 1]} : vector<8x128xf32> to vector<1x128xf32>
    %97 = arith.mulf %95, %96 : vector<1x128xf32>
    %98 = vector.broadcast %85 : vector<1x128xf32> to vector<8x128xf32>
    %99 = arith.subf %81, %98 : vector<8x128xf32>
    %100 = vector.broadcast %97 : vector<1x128xf32> to vector<8x128xf32>
    %101 = arith.mulf %99, %100 : vector<8x128xf32>
    %102 = vector.extract_strided_slice %74 {offsets = [4, 0], sizes = [1, 128], strides = [1, 1]} : vector<8x128xf32> to vector<1x128xf32>
    %103 = vector.broadcast %102 : vector<1x128xf32> to vector<8x128xf32>
    %104 = arith.addf %101, %103 : vector<8x128xf32>
    %c0_43 = arith.constant 0 : index
    %c1024 = arith.constant 1024 : index
    %105 = vector.load %arg5[%c0_43, %c1024] : memref<8x1280xf32, #tpu.memory_space<vmem>>, vector<8x128xf32>
    tpu.vector_store %arg5[%c0_43, %c1024], %104 {strides = array<i32>} : memref<8x1280xf32, #tpu.memory_space<vmem>>, vector<8x128xf32>,
    %c0_44 = arith.constant 0 : index
    %c0_45 = arith.constant 0 : index
    %106 = vector.load %arg4[%c0_44, %c0_45] : memref<136x128xf32, #tpu.memory_space<vmem>>, vector<128x128xf32>
    %c128 = arith.constant 128 : index
    %c0_46 = arith.constant 0 : index
    %107 = vector.load %arg4[%c128, %c0_46] : memref<136x128xf32, #tpu.memory_space<vmem>>, vector<1x128xf32>
    %cst_47 = arith.constant dense<0.000000e+00> : vector<8x128xf32>
    %108 = tpu.matmul %104, %106, %cst_47 {dimension_numbers = #tpu.dot_dimension_numbers<[1], [0], [0], [1], [0, 0, 1, 1], [], []>} : vector<8x128xf32>, vector<128x128xf32>, vector<8x128xf32> -> vector<8x128xf32>
    %109 = vector.broadcast %107 : vector<1x128xf32> to vector<8x128xf32>
    %110 = arith.addf %108, %109 : vector<8x128xf32>
    %cst_48 = arith.constant 0.000000e+00 : f32
    %111 = vector.broadcast %cst_48 : f32 to vector<8x128xf32>
    %112 = arith.maximumf %110, %111 : vector<8x128xf32>
    %c0_49 = arith.constant 0 : index
    %c1152 = arith.constant 1152 : index
    %113 = vector.load %arg5[%c0_49, %c1152] : memref<8x1280xf32, #tpu.memory_space<vmem>>, vector<8x128xf32>
    tpu.vector_store %arg5[%c0_49, %c1152], %112 {strides = array<i32>} : memref<8x1280xf32, #tpu.memory_space<vmem>>, vector<8x128xf32>,
    return
  }
  func.func @transform_0(%arg0: i32) -> (i32, i32) {
    %c0_i32 = arith.constant 0 : i32
    %c0_i32_0 = arith.constant 0 : i32
    %c0_i32_1 = arith.constant 0 : i32
    return %c0_i32, %c0_i32_0 : i32, i32
  }
  func.func @transform_1(%arg0: i32) -> (i32, i32, i32) {
    %c0_i32 = arith.constant 0 : i32
    %c0_i32_0 = arith.constant 0 : i32
    %c0_i32_1 = arith.constant 0 : i32
    %c0_i32_2 = arith.constant 0 : i32
    return %c0_i32, %c0_i32_0, %c0_i32_1 : i32, i32, i32
  }
  func.func @transform_2(%arg0: i32) -> (i32, i32, i32) {
    %c0_i32 = arith.constant 0 : i32
    %c0_i32_0 = arith.constant 0 : i32
    %c0_i32_1 = arith.constant 0 : i32
    %c0_i32_2 = arith.constant 0 : i32
    return %c0_i32, %c0_i32_0, %c0_i32_1 : i32, i32, i32
  }
  func.func @transform_3(%arg0: i32) -> (i32, i32) {
    %c0_i32 = arith.constant 0 : i32
    %c0_i32_0 = arith.constant 0 : i32
    %c0_i32_1 = arith.constant 0 : i32
    return %c0_i32, %c0_i32_0 : i32, i32
  }
  func.func @transform_4(%arg0: i32) -> (i32, i32) {
    %c0_i32 = arith.constant 0 : i32
    %c0_i32_0 = arith.constant 0 : i32
    %c0_i32_1 = arith.constant 0 : i32
    return %c0_i32, %c0_i32_0 : i32, i32
  }
}

</mosaic_0001>

<llo_original>
// kernel: tpu_custom_call.1
$region0: #{tpu_custom_call.1}
  #allocation0 [shape = 'u32[]', space=smem, size = 0x4, offset = 0x4, fixed_abs, tag = 'smem constant byte address 0x4 - core index']
  #allocation1 [shape = 'u32[72,128]{1,0:T(1,128)}', space=vmem, size = 0x9000, scoped, tag = 'internal scratch']
  %s0 = inlined_call_operand.vmem [shape: f32[8,896], index: 0, kind: input, shape index: {}]
  %s1 = inlined_call_operand.vmem [shape: f32[3,896,8], index: 1, kind: input, shape index: {}]
  %s2 = inlined_call_operand.vmem [shape: f32[3,8,512], index: 2, kind: input, shape index: {}]
  %s3 = inlined_call_operand.vmem [shape: f32[136,128], index: 3, kind: input, shape index: {}]
  %s4 = inlined_call_operand.hbm [shape: f32[8,1280], index: 4, kind: output, shape index: {}]
  %s5 = sld [smem:[#allocation0]]
  $region26: #{tpu_custom_call.1} parent=0
    _
  %s7 = ssub.s32 1, %s5
  %s8 = scalar_select 0, %s7, %s5
  $region1: #{tpu_custom_call.1} parent=0
    #allocation2 [shape = 'u8[40960]{0}', space=vmem, size = 0xa000, scoped, tag = 'output window, operand 0, single buffered']
    #allocation3 [shape = 's32[1]{0}', space=sflag, size = 0x4, scoped, tag = 'scoped memory for tpu_custom_call.1']
    %9 = vsyncpa [#allocation3], 0
    // Predicated region
    $region2: #{tpu_custom_call.1} parent=1 // pred_check
      _
    $region3: #{tpu_custom_call.1} parent=1 // pred_check_branch
      %11 = sbr.rel (0) target = $region5
    $region4: #{tpu_custom_call.1} parent=1 // pred_region
      _
    $region5: #{tpu_custom_call.1} parent=1 // pred_fallthru
      _
    // Predicated region
    $region6: #{tpu_custom_call.1} parent=1 // pred_check
      _
    $region7: #{tpu_custom_call.1} parent=1 // pred_check_branch
      %13 = sbr.rel (0) target = $region9
    $region8: #{tpu_custom_call.1} parent=1 // pred_region
      _
    $region9: #{tpu_custom_call.1} parent=1 // pred_fallthru
      _
    // Predicated region
    $region10: #{tpu_custom_call.1} parent=1 // pred_check
      _
    $region11: #{tpu_custom_call.1} parent=1 // pred_check_branch
      %15 = sbr.rel (0) target = $region13
    $region12: #{tpu_custom_call.1} parent=1 // pred_region
      _
    $region13: #{tpu_custom_call.1} parent=1 // pred_fallthru
      _
    // Predicated region
    $region14: #{tpu_custom_call.1} parent=1 // pred_check
      _
    $region15: #{tpu_custom_call.1} parent=1 // pred_check_branch
      %17 = sbr.rel (0) target = $region17
    $region16: #{tpu_custom_call.1} parent=1 // pred_region
      _
    $region17: #{tpu_custom_call.1} parent=1 // pred_fallthru
      _
    %v18 = vld [vmem:[%s0] sm:$0xff]
    %v19 = vld [vmem:[%s0 + $0x8] sm:$0xff]
    %v20 = vld [vmem:[%s0 + $0x10] sm:$0xff]
    %v21 = vld [vmem:[%s0 + $0x18] sm:$0xff]
    %v22 = vld [vmem:[%s0 + $0x20] sm:$0xff]
    %v23 = vld [vmem:[%s0 + $0x28] sm:$0xff]
    %v24 = vld [vmem:[%s0 + $0x30] sm:$0xff]
    %v25 = vld [vmem:[%s1] sm:$0xff]
    %v26 = vld [vmem:[%s1 + $0x8] sm:$0xff]
    %v27 = vld [vmem:[%s1 + $0x10] sm:$0xff]
    %v28 = vld [vmem:[%s1 + $0x18] sm:$0xff]
    %v29 = vld [vmem:[%s1 + $0x20] sm:$0xff]
    %v30 = vld [vmem:[%s1 + $0x28] sm:$0xff]
    %v31 = vld [vmem:[%s1 + $0x30] sm:$0xff]
    %v32 = vld [vmem:[%s1 + $0x38] sm:$0xff]
    %v33 = vld [vmem:[%s1 + $0x40] sm:$0xff]
    %v34 = vld [vmem:[%s1 + $0x48] sm:$0xff]
    %v35 = vld [vmem:[%s1 + $0x50] sm:$0xff]
    %v36 = vld [vmem:[%s1 + $0x58] sm:$0xff]
    %v37 = vld [vmem:[%s1 + $0x60] sm:$0xff]
    %v38 = vld [vmem:[%s1 + $0x68] sm:$0xff]
    %v39 = vld [vmem:[%s1 + $0x70] sm:$0xff]
    %v40 = vld [vmem:[%s1 + $0x78] sm:$0xff]
    %v41 = vld [vmem:[%s1 + $0x80] sm:$0xff]
    %v42 = vld [vmem:[%s1 + $0x88] sm:$0xff]
    %v43 = vld [vmem:[%s1 + $0x90] sm:$0xff]
    %v44 = vld [vmem:[%s1 + $0x98] sm:$0xff]
    %v45 = vld [vmem:[%s1 + $0xa0] sm:$0xff]
    %v46 = vld [vmem:[%s1 + $0xa8] sm:$0xff]
    %v47 = vld [vmem:[%s1 + $0xb0] sm:$0xff]
    %v48 = vld [vmem:[%s1 + $0xb8] sm:$0xff]
    %v49 = vld [vmem:[%s1 + $0xc0] sm:$0xff]
    %v50 = vld [vmem:[%s1 + $0xc8] sm:$0xff]
    %v51 = vld [vmem:[%s1 + $0xd0] sm:$0xff]
    %v52 = vld [vmem:[%s1 + $0xd8] sm:$0xff]
    %v53 = vld [vmem:[%s1 + $0xe0] sm:$0xff]
    %v54 = vld [vmem:[%s1 + $0xe8] sm:$0xff]
    %v55 = vld [vmem:[%s1 + $0xf0] sm:$0xff]
    %v56 = vld [vmem:[%s1 + $0xf8] sm:$0xff]
    %v57 = vld [vmem:[%s1 + $0x100] sm:$0xff]
    %v58 = vld [vmem:[%s1 + $0x108] sm:$0xff]
    %v59 = vld [vmem:[%s1 + $0x110] sm:$0xff]
    %v60 = vld [vmem:[%s1 + $0x118] sm:$0xff]
    %v61 = vld [vmem:[%s1 + $0x120] sm:$0xff]
    %v62 = vld [vmem:[%s1 + $0x128] sm:$0xff]
    %v63 = vld [vmem:[%s1 + $0x130] sm:$0xff]
    %v64 = vld [vmem:[%s1 + $0x138] sm:$0xff]
    %v65 = vld [vmem:[%s1 + $0x140] sm:$0xff]
    %v66 = vld [vmem:[%s1 + $0x148] sm:$0xff]
    %v67 = vld [vmem:[%s1 + $0x150] sm:$0xff]
    %v68 = vld [vmem:[%s1 + $0x158] sm:$0xff]
    %v69 = vld [vmem:[%s1 + $0x160] sm:$0xff]
    %v70 = vld [vmem:[%s1 + $0x168] sm:$0xff]
    %v71 = vld [vmem:[%s1 + $0x170] sm:$0xff]
    %v72 = vld [vmem:[%s1 + $0x178] sm:$0xff]
    %v73 = vld [vmem:[%s1 + $0x180] sm:$0xff]
    %v74 = vld [vmem:[%s1 + $0x188] sm:$0xff]
    %v75 = vld [vmem:[%s1 + $0x190] sm:$0xff]
    %v76 = vld [vmem:[%s1 + $0x198] sm:$0xff]
    %v77 = vld [vmem:[%s1 + $0x1a0] sm:$0xff]
    %v78 = vld [vmem:[%s1 + $0x1a8] sm:$0xff]
    %v79 = vld [vmem:[%s1 + $0x1b0] sm:$0xff]
    %v80 = vld [vmem:[%s1 + $0x1b8] sm:$0xff]
    %v81 = vld [vmem:[%s1 + $0x1c0] sm:$0xff]
    %v82 = vld [vmem:[%s1 + $0x1c8] sm:$0xff]
    %v83 = vld [vmem:[%s1 + $0x1d0] sm:$0xff]
    %v84 = vld [vmem:[%s1 + $0x1d8] sm:$0xff]
    %v85 = vld [vmem:[%s1 + $0x1e0] sm:$0xff]
    %v86 = vld [vmem:[%s1 + $0x1e8] sm:$0xff]
    %v87 = vld [vmem:[%s1 + $0x1f0] sm:$0xff]
    %v88 = vld [vmem:[%s1 + $0x1f8] sm:$0xff]
    %v89 = vld [vmem:[%s1 + $0x200] sm:$0xff]
    %v90 = vld [vmem:[%s1 + $0x208] sm:$0xff]
    %v91 = vld [vmem:[%s1 + $0x210] sm:$0xff]
    %v92 = vld [vmem:[%s1 + $0x218] sm:$0xff]
    %v93 = vld [vmem:[%s1 + $0x220] sm:$0xff]
    %v94 = vld [vmem:[%s1 + $0x228] sm:$0xff]
    %v95 = vld [vmem:[%s1 + $0x230] sm:$0xff]
    %v96 = vld [vmem:[%s1 + $0x238] sm:$0xff]
    %v97 = vld [vmem:[%s1 + $0x240] sm:$0xff]
    %v98 = vld [vmem:[%s1 + $0x248] sm:$0xff]
    %v99 = vld [vmem:[%s1 + $0x250] sm:$0xff]
    %v100 = vld [vmem:[%s1 + $0x258] sm:$0xff]
    %v101 = vld [vmem:[%s1 + $0x260] sm:$0xff]
    %v102 = vld [vmem:[%s1 + $0x268] sm:$0xff]
    %v103 = vld [vmem:[%s1 + $0x270] sm:$0xff]
    %v104 = vld [vmem:[%s1 + $0x278] sm:$0xff]
    %v105 = vld [vmem:[%s1 + $0x280] sm:$0xff]
    %v106 = vld [vmem:[%s1 + $0x288] sm:$0xff]
    %v107 = vld [vmem:[%s1 + $0x290] sm:$0xff]
    %v108 = vld [vmem:[%s1 + $0x298] sm:$0xff]
    %v109 = vld [vmem:[%s1 + $0x2a0] sm:$0xff]
    %v110 = vld [vmem:[%s1 + $0x2a8] sm:$0xff]
    %v111 = vld [vmem:[%s1 + $0x2b0] sm:$0xff]
    %v112 = vld [vmem:[%s1 + $0x2b8] sm:$0xff]
    %v113 = vld [vmem:[%s1 + $0x2c0] sm:$0xff]
    %v114 = vld [vmem:[%s1 + $0x2c8] sm:$0xff]
    %v115 = vld [vmem:[%s1 + $0x2d0] sm:$0xff]
    %v116 = vld [vmem:[%s1 + $0x2d8] sm:$0xff]
    %v117 = vld [vmem:[%s1 + $0x2e0] sm:$0xff]
    %v118 = vld [vmem:[%s1 + $0x2e8] sm:$0xff]
    %v119 = vld [vmem:[%s1 + $0x2f0] sm:$0xff]
    %v120 = vld [vmem:[%s1 + $0x2f8] sm:$0xff]
    %v121 = vld [vmem:[%s1 + $0x300] sm:$0xff]
    %v122 = vld [vmem:[%s1 + $0x308] sm:$0xff]
    %v123 = vld [vmem:[%s1 + $0x310] sm:$0xff]
    %v124 = vld [vmem:[%s1 + $0x318] sm:$0xff]
    %v125 = vld [vmem:[%s1 + $0x320] sm:$0xff]
    %v126 = vld [vmem:[%s1 + $0x328] sm:$0xff]
    %v127 = vld [vmem:[%s1 + $0x330] sm:$0xff]
    %v128 = vld [vmem:[%s1 + $0x338] sm:$0xff]
    %v129 = vld [vmem:[%s1 + $0x340] sm:$0xff]
    %v130 = vld [vmem:[%s1 + $0x348] sm:$0xff]
    %v131 = vld [vmem:[%s1 + $0x350] sm:$0xff]
    %v132 = vld [vmem:[%s1 + $0x358] sm:$0xff]
    %v133 = vld [vmem:[%s1 + $0x360] sm:$0xff]
    %v134 = vld [vmem:[%s1 + $0x368] sm:$0xff]
    %v135 = vld [vmem:[%s1 + $0x370] sm:$0xff]
    %v136 = vld [vmem:[%s1 + $0x378] sm:$0xff]
    %v137 = vld [vmem:[%s2] sm:$0xff]
    %v138 = vld [vmem:[%s2 + $0x8] sm:$0xff]
    %v139 = vld [vmem:[%s2 + $0x10] sm:$0xff]
    %v140 = vld [vmem:[%s2 + $0x18] sm:$0xff]
    %141 = vmatpush.msra.mxu0 %v40
    %142 = vmatpush.msra.mxu0 %v39
    %143 = vmatpush.msra.mxu0 %v38
    %144 = vmatpush.msra.mxu0 %v37
    %145 = vmatpush.msra.mxu0 %v36
    %146 = vmatpush.msra.mxu0 %v35
    %147 = vmatpush.msra.mxu0 %v34
    %148 = vmatpush.msra.mxu0 %v33
    %149 = vmatpush.msra.mxu0 %v32
    %150 = vmatpush.msra.mxu0 %v31
    %151 = vmatpush.msra.mxu0 %v30
    %152 = vmatpush.msra.mxu0 %v29
    %153 = vmatpush.msra.mxu0 %v28
    %154 = vmatpush.msra.mxu0 %v27
    %155 = vmatpush.msra.mxu0 %v26
    %156 = vmatpush.msra.mxu0 %v25
    %157 = vmatmul.f32.gmra.mxu0 %v18
    %v158 = vpop.f32.mrf.mxu0
    %v159 = vadd.f32 0.0, %v158
    %160 = vdwg.mxu0
    %161 = vmatpush.msra.mxu0 %v56
    %162 = vmatpush.msra.mxu0 %v55
    %163 = vmatpush.msra.mxu0 %v54
    %164 = vmatpush.msra.mxu0 %v53
    %165 = vmatpush.msra.mxu0 %v52
    %166 = vmatpush.msra.mxu0 %v51
    %167 = vmatpush.msra.mxu0 %v50
    %168 = vmatpush.msra.mxu0 %v49
    %169 = vmatpush.msra.mxu0 %v48
    %170 = vmatpush.msra.mxu0 %v47
    %171 = vmatpush.msra.mxu0 %v46
    %172 = vmatpush.msra.mxu0 %v45
    %173 = vmatpush.msra.mxu0 %v44
    %174 = vmatpush.msra.mxu0 %v43
    %175 = vmatpush.msra.mxu0 %v42
    %176 = vmatpush.msra.mxu0 %v41
    %177 = vmatmul.f32.gmra.mxu0 %v19
    %v178 = vpop.f32.mrf.mxu0
    %v179 = vadd.f32 %v159, %v178
    %180 = vdwg.mxu0
    %181 = vmatpush.msra.mxu0 %v72
    %182 = vmatpush.msra.mxu0 %v71
    %183 = vmatpush.msra.mxu0 %v70
    %184 = vmatpush.msra.mxu0 %v69
    %185 = vmatpush.msra.mxu0 %v68
    %186 = vmatpush.msra.mxu0 %v67
    %187 = vmatpush.msra.mxu0 %v66
    %188 = vmatpush.msra.mxu0 %v65
    %189 = vmatpush.msra.mxu0 %v64
    %190 = vmatpush.msra.mxu0 %v63
    %191 = vmatpush.msra.mxu0 %v62
    %192 = vmatpush.msra.mxu0 %v61
    %193 = vmatpush.msra.mxu0 %v60
    %194 = vmatpush.msra.mxu0 %v59
    %195 = vmatpush.msra.mxu0 %v58
    %196 = vmatpush.msra.mxu0 %v57
    %197 = vmatmul.f32.gmra.mxu0 %v20
    %v198 = vpop.f32.mrf.mxu0
    %v199 = vadd.f32 %v179, %v198
    %200 = vdwg.mxu0
    %201 = vmatpush.msra.mxu0 %v88
    %202 = vmatpush.msra.mxu0 %v87
    %203 = vmatpush.msra.mxu0 %v86
    %204 = vmatpush.msra.mxu0 %v85
    %205 = vmatpush.msra.mxu0 %v84
    %206 = vmatpush.msra.mxu0 %v83
    %207 = vmatpush.msra.mxu0 %v82
    %208 = vmatpush.msra.mxu0 %v81
    %209 = vmatpush.msra.mxu0 %v80
    %210 = vmatpush.msra.mxu0 %v79
    %211 = vmatpush.msra.mxu0 %v78
    %212 = vmatpush.msra.mxu0 %v77
    %213 = vmatpush.msra.mxu0 %v76
    %214 = vmatpush.msra.mxu0 %v75
    %215 = vmatpush.msra.mxu0 %v74
    %216 = vmatpush.msra.mxu0 %v73
    %217 = vmatmul.f32.gmra.mxu0 %v21
    %v218 = vpop.f32.mrf.mxu0
    %v219 = vadd.f32 %v199, %v218
    %220 = vdwg.mxu0
    %221 = vmatpush.msra.mxu0 %v104
    %222 = vmatpush.msra.mxu0 %v103
    %223 = vmatpush.msra.mxu0 %v102
    %224 = vmatpush.msra.mxu0 %v101
    %225 = vmatpush.msra.mxu0 %v100
    %226 = vmatpush.msra.mxu0 %v99
    %227 = vmatpush.msra.mxu0 %v98
    %228 = vmatpush.msra.mxu0 %v97
    %229 = vmatpush.msra.mxu0 %v96
    %230 = vmatpush.msra.mxu0 %v95
    %231 = vmatpush.msra.mxu0 %v94
    %232 = vmatpush.msra.mxu0 %v93
    %233 = vmatpush.msra.mxu0 %v92
    %234 = vmatpush.msra.mxu0 %v91
    %235 = vmatpush.msra.mxu0 %v90
    %236 = vmatpush.msra.mxu0 %v89
    %237 = vmatmul.f32.gmra.mxu0 %v22
    %v238 = vpop.f32.mrf.mxu0
    %v239 = vadd.f32 %v219, %v238
    %240 = vdwg.mxu0
    %241 = vmatpush.msra.mxu0 %v120
    %242 = vmatpush.msra.mxu0 %v119
    %243 = vmatpush.msra.mxu0 %v118
    %244 = vmatpush.msra.mxu0 %v117
    %245 = vmatpush.msra.mxu0 %v116
    %246 = vmatpush.msra.mxu0 %v115
    %247 = vmatpush.msra.mxu0 %v114
    %248 = vmatpush.msra.mxu0 %v113
    %249 = vmatpush.msra.mxu0 %v112
    %250 = vmatpush.msra.mxu0 %v111
    %251 = vmatpush.msra.mxu0 %v110
    %252 = vmatpush.msra.mxu0 %v109
    %253 = vmatpush.msra.mxu0 %v108
    %254 = vmatpush.msra.mxu0 %v107
    %255 = vmatpush.msra.mxu0 %v106
    %256 = vmatpush.msra.mxu0 %v105
    %257 = vmatmul.f32.gmra.mxu0 %v23
    %v258 = vpop.f32.mrf.mxu0
    %v259 = vadd.f32 %v239, %v258
    %260 = vdwg.mxu0
    %261 = vmatpush.msra.mxu0 %v136
    %262 = vmatpush.msra.mxu0 %v135
    %263 = vmatpush.msra.mxu0 %v134
    %264 = vmatpush.msra.mxu0 %v133
    %265 = vmatpush.msra.mxu0 %v132
    %266 = vmatpush.msra.mxu0 %v131
    %267 = vmatpush.msra.mxu0 %v130
    %268 = vmatpush.msra.mxu0 %v129
    %269 = vmatpush.msra.mxu0 %v128
    %270 = vmatpush.msra.mxu0 %v127
    %271 = vmatpush.msra.mxu0 %v126
    %272 = vmatpush.msra.mxu0 %v125
    %273 = vmatpush.msra.mxu0 %v124
    %274 = vmatpush.msra.mxu0 %v123
    %275 = vmatpush.msra.mxu0 %v122
    %276 = vmatpush.msra.mxu0 %v121
    %277 = vmatmul.f32.gmra.mxu0 %v24
    %v278 = vpop.f32.mrf.mxu0
    %v279 = vadd.f32 %v259, %v278
    %280 = vdwg.mxu0
    %v281 = vperm.slane %v137, 2
    %v282 = vperm.slane %v138, 2
    %v283 = vperm.slane %v139, 2
    %v284 = vperm.slane %v140, 2
    %vm285 = vcmask 64512
    %v287 = vsel %vm285, %v279, 0
    %289 = vmatpush.msra.mxu0 0.0
    %290 = vmatpush.msra.mxu0 0.0
    %291 = vmatpush.msra.mxu0 0.0
    %292 = vmatpush.msra.mxu0 0.0
    %293 = vmatpush.msra.mxu0 0.0
    %294 = vmatpush.msra.mxu0 0.0
    %295 = vmatpush.msra.mxu0 0.0
    %296 = vmatpush.msra.mxu0 0.0
    %297 = vmatpush.msra.mxu0 0.0
    %298 = vmatpush.msra.mxu0 0.0
    %299 = vmatpush.msra.mxu0 0.0
    %300 = vmatpush.msra.mxu0 0.0
    %301 = vmatpush.msra.mxu0 0.0
    %302 = vmatpush.msra.mxu0 0.0
    %303 = vmatpush.msra.mxu0 0.0
    %304 = vmatpush.msra.mxu0 %v137
    %305 = vmatmul.f32.gmra.mxu0 %v287
    %v306 = vpop.f32.mrf.mxu0
    %v307 = vadd.f32 %v281, %v306
    %308 = vdwg.mxu0
    %309 = vmatpush.msra.mxu0 0.0
    %310 = vmatpush.msra.mxu0 0.0
    %311 = vmatpush.msra.mxu0 0.0
    %312 = vmatpush.msra.mxu0 0.0
    %313 = vmatpush.msra.mxu0 0.0
    %314 = vmatpush.msra.mxu0 0.0
    %315 = vmatpush.msra.mxu0 0.0
    %316 = vmatpush.msra.mxu0 0.0
    %317 = vmatpush.msra.mxu0 0.0
    %318 = vmatpush.msra.mxu0 0.0
    %319 = vmatpush.msra.mxu0 0.0
    %320 = vmatpush.msra.mxu0 0.0
    %321 = vmatpush.msra.mxu0 0.0
    %322 = vmatpush.msra.mxu0 0.0
    %323 = vmatpush.msra.mxu0 0.0
    %324 = vmatpush.msra.mxu0 %v138
    %325 = vmatmul.f32.gmra.mxu0 %v287
    %v326 = vpop.f32.mrf.mxu0
    %v327 = vadd.f32 %v282, %v326
    %328 = vdwg.mxu0
    %329 = vmatpush.msra.mxu0 0.0
    %330 = vmatpush.msra.mxu0 0.0
    %331 = vmatpush.msra.mxu0 0.0
    %332 = vmatpush.msra.mxu0 0.0
    %333 = vmatpush.msra.mxu0 0.0
    %334 = vmatpush.msra.mxu0 0.0
    %335 = vmatpush.msra.mxu0 0.0
    %336 = vmatpush.msra.mxu0 0.0
    %337 = vmatpush.msra.mxu0 0.0
    %338 = vmatpush.msra.mxu0 0.0
    %339 = vmatpush.msra.mxu0 0.0
    %340 = vmatpush.msra.mxu0 0.0
    %341 = vmatpush.msra.mxu0 0.0
    %342 = vmatpush.msra.mxu0 0.0
    %343 = vmatpush.msra.mxu0 0.0
    %344 = vmatpush.msra.mxu0 %v139
    %345 = vmatmul.f32.gmra.mxu0 %v287
    %v346 = vpop.f32.mrf.mxu0
    %v347 = vadd.f32 %v283, %v346
    %348 = vdwg.mxu0
    %349 = vmatpush.msra.mxu0 0.0
    %350 = vmatpush.msra.mxu0 0.0
    %351 = vmatpush.msra.mxu0 0.0
    %352 = vmatpush.msra.mxu0 0.0
    %353 = vmatpush.msra.mxu0 0.0
    %354 = vmatpush.msra.mxu0 0.0
    %355 = vmatpush.msra.mxu0 0.0
    %356 = vmatpush.msra.mxu0 0.0
    %357 = vmatpush.msra.mxu0 0.0
    %358 = vmatpush.msra.mxu0 0.0
    %359 = vmatpush.msra.mxu0 0.0
    %360 = vmatpush.msra.mxu0 0.0
    %361 = vmatpush.msra.mxu0 0.0
    %362 = vmatpush.msra.mxu0 0.0
    %363 = vmatpush.msra.mxu0 0.0
    %364 = vmatpush.msra.mxu0 %v140
    %365 = vmatmul.f32.gmra.mxu0 %v287
    %v366 = vpop.f32.mrf.mxu0
    %v367 = vadd.f32 %v284, %v366
    %368 = vdwg.mxu0
    %v369 = vmax.f32 %v307, 0.0
    %v370 = vmax.f32 %v327, 0.0
    %v371 = vmax.f32 %v347, 0.0
    %v372 = vmax.f32 %v367, 0.0
    %v373 = vrot.slane %v369, 4
    %v374 = vadd.f32 %v369, %v373
    %v375 = vrot.slane %v374, 2
    %v376 = vadd.f32 %v374, %v375
    %v377 = vrot.slane %v376, 1
    %v378 = vadd.f32 %v376, %v377
    %v379 = vrot.slane %v370, 4
    %v380 = vadd.f32 %v370, %v379
    %v381 = vrot.slane %v380, 2
    %v382 = vadd.f32 %v380, %v381
    %v383 = vrot.slane %v382, 1
    %v384 = vadd.f32 %v382, %v383
    %v385 = vrot.slane %v371, 4
    %v386 = vadd.f32 %v371, %v385
    %v387 = vrot.slane %v386, 2
    %v388 = vadd.f32 %v386, %v387
    %v389 = vrot.slane %v388, 1
    %v390 = vadd.f32 %v388, %v389
    %v391 = vrot.slane %v372, 4
    %v392 = vadd.f32 %v372, %v391
    %v393 = vrot.slane %v392, 2
    %v394 = vadd.f32 %v392, %v393
    %v395 = vrot.slane %v394, 1
    %v396 = vadd.f32 %v394, %v395
    %v397 = vrcp.pop 8.0
    %v398 = vmul.f32 8.0, %v397
    %v399 = vsub.f32 1.0, %v398
    %v400 = vmul.f32 %v397, %v399
    %v401 = vadd.f32 %v397, %v400
    %vm402 = vweird.f32 %v397
    %v403 = vsel %vm402, %v397, %v401
    %v404 = vmul.f32 %v378, %v403
    %v405 = vmul.f32 %v384, %v403
    %v406 = vmul.f32 %v390, %v403
    %v407 = vmul.f32 %v396, %v403
    %v408 = vsub.f32 %v369, %v404
    %v409 = vsub.f32 %v370, %v405
    %v410 = vsub.f32 %v371, %v406
    %v411 = vsub.f32 %v372, %v407
    %v412 = vmul.f32 %v408, %v408
    %v413 = vmul.f32 %v409, %v409
    %v414 = vmul.f32 %v410, %v410
    %v415 = vmul.f32 %v411, %v411
    %v416 = vrot.slane %v412, 4
    %v417 = vadd.f32 %v412, %v416
    %v418 = vrot.slane %v417, 2
    %v419 = vadd.f32 %v417, %v418
    %v420 = vrot.slane %v419, 1
    %v421 = vadd.f32 %v419, %v420
    %v422 = vrot.slane %v413, 4
    %v423 = vadd.f32 %v413, %v422
    %v424 = vrot.slane %v423, 2
    %v425 = vadd.f32 %v423, %v424
    %v426 = vrot.slane %v425, 1
    %v427 = vadd.f32 %v425, %v426
    %v428 = vrot.slane %v414, 4
    %v429 = vadd.f32 %v414, %v428
    %v430 = vrot.slane %v429, 2
    %v431 = vadd.f32 %v429, %v430
    %v432 = vrot.slane %v431, 1
    %v433 = vadd.f32 %v431, %v432
    %v434 = vrot.slane %v415, 4
    %v435 = vadd.f32 %v415, %v434
    %v436 = vrot.slane %v435, 2
    %v437 = vadd.f32 %v435, %v436
    %v438 = vrot.slane %v437, 1
    %v439 = vadd.f32 %v437, %v438
    %v440 = vmul.f32 %v421, %v403
    %v441 = vmul.f32 %v427, %v403
    %v442 = vmul.f32 %v433, %v403
    %v443 = vmul.f32 %v439, %v403
    %v444 = vadd.f32 %v440, 1e-05
    %v445 = vadd.f32 %v441, 1e-05
    %v446 = vadd.f32 %v442, 1e-05
    %v447 = vadd.f32 %v443, 1e-05
    %v448 = vrsqrt.pop %v444
    %v449 = vmul.f32 %v448, %v444
    %v450 = vmul.f32 %v449, %v448
    %v451 = vmul.f32 0.5, %v450
    %v452 = vsub.f32 1.5, %v451
    %v453 = vmul.f32 %v448, %v452
    %vm454 = vweird.f32 %v444
    %vm455 = vweird.f32 %v448
    %vm456 = vmor %vm454, %vm455
    %v457 = vsel %vm456, %v448, %v453
    %v458 = vrsqrt.pop %v445
    %v459 = vmul.f32 %v458, %v445
    %v460 = vmul.f32 %v459, %v458
    %v461 = vmul.f32 0.5, %v460
    %v462 = vsub.f32 1.5, %v461
    %v463 = vmul.f32 %v458, %v462
    %vm464 = vweird.f32 %v445
    %vm465 = vweird.f32 %v458
    %vm466 = vmor %vm464, %vm465
    %v467 = vsel %vm466, %v458, %v463
    %v468 = vrsqrt.pop %v446
    %v469 = vmul.f32 %v468, %v446
    %v470 = vmul.f32 %v469, %v468
    %v471 = vmul.f32 0.5, %v470
    %v472 = vsub.f32 1.5, %v471
    %v473 = vmul.f32 %v468, %v472
    %vm474 = vweird.f32 %v446
    %vm475 = vweird.f32 %v468
    %vm476 = vmor %vm474, %vm475
    %v477 = vsel %vm476, %v468, %v473
    %v478 = vrsqrt.pop %v447
    %v479 = vmul.f32 %v478, %v447
    %v480 = vmul.f32 %v479, %v478
    %v481 = vmul.f32 0.5, %v480
    %v482 = vsub.f32 1.5, %v481
    %v483 = vmul.f32 %v478, %v482
    %vm484 = vweird.f32 %v447
    %vm485 = vweird.f32 %v478
    %vm486 = vmor %vm484, %vm485
    %v487 = vsel %vm486, %v478, %v483
    %v488 = vmul.f32 %v457, %v137
    %v489 = vmul.f32 %v467, %v138
    %v490 = vmul.f32 %v477, %v139
    %v491 = vmul.f32 %v487, %v140
    %v492 = vperm.slane %v488, 3
    %v493 = vperm.slane %v489, 3
    %v494 = vperm.slane %v490, 3
    %v495 = vperm.slane %v491, 3
    %v496 = vmul.f32 %v408, %v492
    %v497 = vmul.f32 %v409, %v493
    %v498 = vmul.f32 %v410, %v494
    %v499 = vmul.f32 %v411, %v495
    %v500 = vperm.slane %v137, 4
    %v501 = vperm.slane %v138, 4
    %v502 = vperm.slane %v139, 4
    %v503 = vperm.slane %v140, 4
    %v504 = vadd.f32 %v496, %v500
    %v505 = vadd.f32 %v497, %v501
    %v506 = vadd.f32 %v498, %v502
    %v507 = vadd.f32 %v499, %v503
    %508 = vst [vmem:[#allocation2] sm:$0xff] %v504
    %509 = vst [vmem:[#allocation2 + $0x8] sm:$0xff] %v505
    %510 = vst [vmem:[#allocation2 + $0x10] sm:$0xff] %v506
    %511 = vst [vmem:[#allocation2 + $0x18] sm:$0xff] %v507
    %s512 = scalar_lea.vmem %s1, 896
    %v513 = vld [vmem:[%s512] sm:$0xff]
    %v514 = vld [vmem:[%s512 + $0x8] sm:$0xff]
    %v515 = vld [vmem:[%s512 + $0x10] sm:$0xff]
    %v516 = vld [vmem:[%s512 + $0x18] sm:$0xff]
    %v517 = vld [vmem:[%s512 + $0x20] sm:$0xff]
    %v518 = vld [vmem:[%s512 + $0x28] sm:$0xff]
    %v519 = vld [vmem:[%s512 + $0x30] sm:$0xff]
    %v520 = vld [vmem:[%s512 + $0x38] sm:$0xff]
    %v521 = vld [vmem:[%s512 + $0x40] sm:$0xff]
    %v522 = vld [vmem:[%s512 + $0x48] sm:$0xff]
    %v523 = vld [vmem:[%s512 + $0x50] sm:$0xff]
    %v524 = vld [vmem:[%s512 + $0x58] sm:$0xff]
    %v525 = vld [vmem:[%s512 + $0x60] sm:$0xff]
    %v526 = vld [vmem:[%s512 + $0x68] sm:$0xff]
    %v527 = vld [vmem:[%s512 + $0x70] sm:$0xff]
    %v528 = vld [vmem:[%s512 + $0x78] sm:$0xff]
    %v529 = vld [vmem:[%s512 + $0x80] sm:$0xff]
    %v530 = vld [vmem:[%s512 + $0x88] sm:$0xff]
    %v531 = vld [vmem:[%s512 + $0x90] sm:$0xff]
    %v532 = vld [vmem:[%s512 + $0x98] sm:$0xff]
    %v533 = vld [vmem:[%s512 + $0xa0] sm:$0xff]
    %v534 = vld [vmem:[%s512 + $0xa8] sm:$0xff]
    %v535 = vld [vmem:[%s512 + $0xb0] sm:$0xff]
    %v536 = vld [vmem:[%s512 + $0xb8] sm:$0xff]
    %v537 = vld [vmem:[%s512 + $0xc0] sm:$0xff]
    %v538 = vld [vmem:[%s512 + $0xc8] sm:$0xff]
    %v539 = vld [vmem:[%s512 + $0xd0] sm:$0xff]
    %v540 = vld [vmem:[%s512 + $0xd8] sm:$0xff]
    %v541 = vld [vmem:[%s512 + $0xe0] sm:$0xff]
    %v542 = vld [vmem:[%s512 + $0xe8] sm:$0xff]
    %v543 = vld [vmem:[%s512 + $0xf0] sm:$0xff]
    %v544 = vld [vmem:[%s512 + $0xf8] sm:$0xff]
    %v545 = vld [vmem:[%s512 + $0x100] sm:$0xff]
    %v546 = vld [vmem:[%s512 + $0x108] sm:$0xff]
    %v547 = vld [vmem:[%s512 + $0x110] sm:$0xff]
    %v548 = vld [vmem:[%s512 + $0x118] sm:$0xff]
    %v549 = vld [vmem:[%s512 + $0x120] sm:$0xff]
    %v550 = vld [vmem:[%s512 + $0x128] sm:$0xff]
    %v551 = vld [vmem:[%s512 + $0x130] sm:$0xff]
    %v552 = vld [vmem:[%s512 + $0x138] sm:$0xff]
    %v553 = vld [vmem:[%s512 + $0x140] sm:$0xff]
    %v554 = vld [vmem:[%s512 + $0x148] sm:$0xff]
    %v555 = vld [vmem:[%s512 + $0x150] sm:$0xff]
    %v556 = vld [vmem:[%s512 + $0x158] sm:$0xff]
    %v557 = vld [vmem:[%s512 + $0x160] sm:$0xff]
    %v558 = vld [vmem:[%s512 + $0x168] sm:$0xff]
    %v559 = vld [vmem:[%s512 + $0x170] sm:$0xff]
    %v560 = vld [vmem:[%s512 + $0x178] sm:$0xff]
    %v561 = vld [vmem:[%s512 + $0x180] sm:$0xff]
    %v562 = vld [vmem:[%s512 + $0x188] sm:$0xff]
    %v563 = vld [vmem:[%s512 + $0x190] sm:$0xff]
    %v564 = vld [vmem:[%s512 + $0x198] sm:$0xff]
    %v565 = vld [vmem:[%s512 + $0x1a0] sm:$0xff]
    %v566 = vld [vmem:[%s512 + $0x1a8] sm:$0xff]
    %v567 = vld [vmem:[%s512 + $0x1b0] sm:$0xff]
    %v568 = vld [vmem:[%s512 + $0x1b8] sm:$0xff]
    %v569 = vld [vmem:[%s512 + $0x1c0] sm:$0xff]
    %v570 = vld [vmem:[%s512 + $0x1c8] sm:$0xff]
    %v571 = vld [vmem:[%s512 + $0x1d0] sm:$0xff]
    %v572 = vld [vmem:[%s512 + $0x1d8] sm:$0xff]
    %v573 = vld [vmem:[%s512 + $0x1e0] sm:$0xff]
    %v574 = vld [vmem:[%s512 + $0x1e8] sm:$0xff]
    %v575 = vld [vmem:[%s512 + $0x1f0] sm:$0xff]
    %v576 = vld [vmem:[%s512 + $0x1f8] sm:$0xff]
    %s577 = scalar_lea.vmem %s2, 32
    %v578 = vld [vmem:[%s577] sm:$0xff]
    %v579 = vld [vmem:[%s577 + $0x8] sm:$0xff]
    %v580 = vld [vmem:[%s577 + $0x10] sm:$0xff]
    %v581 = vld [vmem:[%s577 + $0x18] sm:$0xff]
    %582 = vmatpush.msra.mxu0 %v528
    %583 = vmatpush.msra.mxu0 %v527
    %584 = vmatpush.msra.mxu0 %v526
    %585 = vmatpush.msra.mxu0 %v525
    %586 = vmatpush.msra.mxu0 %v524
    %587 = vmatpush.msra.mxu0 %v523
    %588 = vmatpush.msra.mxu0 %v522
    %589 = vmatpush.msra.mxu0 %v521
    %590 = vmatpush.msra.mxu0 %v520
    %591 = vmatpush.msra.mxu0 %v519
    %592 = vmatpush.msra.mxu0 %v518
    %593 = vmatpush.msra.mxu0 %v517
    %594 = vmatpush.msra.mxu0 %v516
    %595 = vmatpush.msra.mxu0 %v515
    %596 = vmatpush.msra.mxu0 %v514
    %597 = vmatpush.msra.mxu0 %v513
    %598 = vmatmul.f32.gmra.mxu0 %v504
    %v599 = vpop.f32.mrf.mxu0
    %v600 = vadd.f32 0.0, %v599
    %601 = vdwg.mxu0
    %602 = vmatpush.msra.mxu0 %v544
    %603 = vmatpush.msra.mxu0 %v543
    %604 = vmatpush.msra.mxu0 %v542
    %605 = vmatpush.msra.mxu0 %v541
    %606 = vmatpush.msra.mxu0 %v540
    %607 = vmatpush.msra.mxu0 %v539
    %608 = vmatpush.msra.mxu0 %v538
    %609 = vmatpush.msra.mxu0 %v537
    %610 = vmatpush.msra.mxu0 %v536
    %611 = vmatpush.msra.mxu0 %v535
    %612 = vmatpush.msra.mxu0 %v534
    %613 = vmatpush.msra.mxu0 %v533
    %614 = vmatpush.msra.mxu0 %v532
    %615 = vmatpush.msra.mxu0 %v531
    %616 = vmatpush.msra.mxu0 %v530
    %617 = vmatpush.msra.mxu0 %v529
    %618 = vmatmul.f32.gmra.mxu0 %v505
    %v619 = vpop.f32.mrf.mxu0
    %v620 = vadd.f32 %v600, %v619
    %621 = vdwg.mxu0
    %622 = vmatpush.msra.mxu0 %v560
    %623 = vmatpush.msra.mxu0 %v559
    %624 = vmatpush.msra.mxu0 %v558
    %625 = vmatpush.msra.mxu0 %v557
    %626 = vmatpush.msra.mxu0 %v556
    %627 = vmatpush.msra.mxu0 %v555
    %628 = vmatpush.msra.mxu0 %v554
    %629 = vmatpush.msra.mxu0 %v553
    %630 = vmatpush.msra.mxu0 %v552
    %631 = vmatpush.msra.mxu0 %v551
    %632 = vmatpush.msra.mxu0 %v550
    %633 = vmatpush.msra.mxu0 %v549
    %634 = vmatpush.msra.mxu0 %v548
    %635 = vmatpush.msra.mxu0 %v547
    %636 = vmatpush.msra.mxu0 %v546
    %637 = vmatpush.msra.mxu0 %v545
    %638 = vmatmul.f32.gmra.mxu0 %v506
    %v639 = vpop.f32.mrf.mxu0
    %v640 = vadd.f32 %v620, %v639
    %641 = vdwg.mxu0
    %642 = vmatpush.msra.mxu0 %v576
    %643 = vmatpush.msra.mxu0 %v575
    %644 = vmatpush.msra.mxu0 %v574
    %645 = vmatpush.msra.mxu0 %v573
    %646 = vmatpush.msra.mxu0 %v572
    %647 = vmatpush.msra.mxu0 %v571
    %648 = vmatpush.msra.mxu0 %v570
    %649 = vmatpush.msra.mxu0 %v569
    %650 = vmatpush.msra.mxu0 %v568
    %651 = vmatpush.msra.mxu0 %v567
    %652 = vmatpush.msra.mxu0 %v566
    %653 = vmatpush.msra.mxu0 %v565
    %654 = vmatpush.msra.mxu0 %v564
    %655 = vmatpush.msra.mxu0 %v563
    %656 = vmatpush.msra.mxu0 %v562
    %657 = vmatpush.msra.mxu0 %v561
    %658 = vmatmul.f32.gmra.mxu0 %v507
    %v659 = vpop.f32.mrf.mxu0
    %v660 = vadd.f32 %v640, %v659
    %661 = vdwg.mxu0
    %v662 = vperm.slane %v578, 2
    %v663 = vperm.slane %v579, 2
    %v664 = vperm.slane %v580, 2
    %v665 = vperm.slane %v581, 2
    %v667 = vsel %vm285, %v660, 0
    %669 = vmatpush.msra.mxu0 0.0
    %670 = vmatpush.msra.mxu0 0.0
    %671 = vmatpush.msra.mxu0 0.0
    %672 = vmatpush.msra.mxu0 0.0
    %673 = vmatpush.msra.mxu0 0.0
    %674 = vmatpush.msra.mxu0 0.0
    %675 = vmatpush.msra.mxu0 0.0
    %676 = vmatpush.msra.mxu0 0.0
    %677 = vmatpush.msra.mxu0 0.0
    %678 = vmatpush.msra.mxu0 0.0
    %679 = vmatpush.msra.mxu0 0.0
    %680 = vmatpush.msra.mxu0 0.0
    %681 = vmatpush.msra.mxu0 0.0
    %682 = vmatpush.msra.mxu0 0.0
    %683 = vmatpush.msra.mxu0 0.0
    %684 = vmatpush.msra.mxu0 %v578
    %685 = vmatmul.f32.gmra.mxu0 %v667
    %v686 = vpop.f32.mrf.mxu0
    %v687 = vadd.f32 %v662, %v686
    %688 = vdwg.mxu0
    %689 = vmatpush.msra.mxu0 0.0
    %690 = vmatpush.msra.mxu0 0.0
    %691 = vmatpush.msra.mxu0 0.0
    %692 = vmatpush.msra.mxu0 0.0
    %693 = vmatpush.msra.mxu0 0.0
    %694 = vmatpush.msra.mxu0 0.0
    %695 = vmatpush.msra.mxu0 0.0
    %696 = vmatpush.msra.mxu0 0.0
    %697 = vmatpush.msra.mxu0 0.0
    %698 = vmatpush.msra.mxu0 0.0
    %699 = vmatpush.msra.mxu0 0.0
    %700 = vmatpush.msra.mxu0 0.0
    %701 = vmatpush.msra.mxu0 0.0
    %702 = vmatpush.msra.mxu0 0.0
    %703 = vmatpush.msra.mxu0 0.0
    %704 = vmatpush.msra.mxu0 %v579
    %705 = vmatmul.f32.gmra.mxu0 %v667
    %v706 = vpop.f32.mrf.mxu0
    %v707 = vadd.f32 %v663, %v706
    %708 = vdwg.mxu0
    %709 = vmatpush.msra.mxu0 0.0
    %710 = vmatpush.msra.mxu0 0.0
    %711 = vmatpush.msra.mxu0 0.0
    %712 = vmatpush.msra.mxu0 0.0
    %713 = vmatpush.msra.mxu0 0.0
    %714 = vmatpush.msra.mxu0 0.0
    %715 = vmatpush.msra.mxu0 0.0
    %716 = vmatpush.msra.mxu0 0.0
    %717 = vmatpush.msra.mxu0 0.0
    %718 = vmatpush.msra.mxu0 0.0
    %719 = vmatpush.msra.mxu0 0.0
    %720 = vmatpush.msra.mxu0 0.0
    %721 = vmatpush.msra.mxu0 0.0
    %722 = vmatpush.msra.mxu0 0.0
    %723 = vmatpush.msra.mxu0 0.0
    %724 = vmatpush.msra.mxu0 %v580
    %725 = vmatmul.f32.gmra.mxu0 %v667
    %v726 = vpop.f32.mrf.mxu0
    %v727 = vadd.f32 %v664, %v726
    %728 = vdwg.mxu0
    %729 = vmatpush.msra.mxu0 0.0
    %730 = vmatpush.msra.mxu0 0.0
    %731 = vmatpush.msra.mxu0 0.0
    %732 = vmatpush.msra.mxu0 0.0
    %733 = vmatpush.msra.mxu0 0.0
    %734 = vmatpush.msra.mxu0 0.0
    %735 = vmatpush.msra.mxu0 0.0
    %736 = vmatpush.msra.mxu0 0.0
    %737 = vmatpush.msra.mxu0 0.0
    %738 = vmatpush.msra.mxu0 0.0
    %739 = vmatpush.msra.mxu0 0.0
    %740 = vmatpush.msra.mxu0 0.0
    %741 = vmatpush.msra.mxu0 0.0
    %742 = vmatpush.msra.mxu0 0.0
    %743 = vmatpush.msra.mxu0 0.0
    %744 = vmatpush.msra.mxu0 %v581
    %745 = vmatmul.f32.gmra.mxu0 %v667
    %v746 = vpop.f32.mrf.mxu0
    %v747 = vadd.f32 %v665, %v746
    %748 = vdwg.mxu0
    %v749 = vmax.f32 %v687, 0.0
    %v750 = vmax.f32 %v707, 0.0
    %v751 = vmax.f32 %v727, 0.0
    %v752 = vmax.f32 %v747, 0.0
    %v753 = vrot.slane %v749, 4
    %v754 = vadd.f32 %v749, %v753
    %v755 = vrot.slane %v754, 2
    %v756 = vadd.f32 %v754, %v755
    %v757 = vrot.slane %v756, 1
    %v758 = vadd.f32 %v756, %v757
    %v759 = vrot.slane %v750, 4
    %v760 = vadd.f32 %v750, %v759
    %v761 = vrot.slane %v760, 2
    %v762 = vadd.f32 %v760, %v761
    %v763 = vrot.slane %v762, 1
    %v764 = vadd.f32 %v762, %v763
    %v765 = vrot.slane %v751, 4
    %v766 = vadd.f32 %v751, %v765
    %v767 = vrot.slane %v766, 2
    %v768 = vadd.f32 %v766, %v767
    %v769 = vrot.slane %v768, 1
    %v770 = vadd.f32 %v768, %v769
    %v771 = vrot.slane %v752, 4
    %v772 = vadd.f32 %v752, %v771
    %v773 = vrot.slane %v772, 2
    %v774 = vadd.f32 %v772, %v773
    %v775 = vrot.slane %v774, 1
    %v776 = vadd.f32 %v774, %v775
    %v777 = vmul.f32 %v758, %v403
    %v778 = vmul.f32 %v764, %v403
    %v779 = vmul.f32 %v770, %v403
    %v780 = vmul.f32 %v776, %v403
    %v781 = vsub.f32 %v749, %v777
    %v782 = vsub.f32 %v750, %v778
    %v783 = vsub.f32 %v751, %v779
    %v784 = vsub.f32 %v752, %v780
    %v785 = vmul.f32 %v781, %v781
    %v786 = vmul.f32 %v782, %v782
    %v787 = vmul.f32 %v783, %v783
    %v788 = vmul.f32 %v784, %v784
    %v789 = vrot.slane %v785, 4
    %v790 = vadd.f32 %v785, %v789
    %v791 = vrot.slane %v790, 2
    %v792 = vadd.f32 %v790, %v791
    %v793 = vrot.slane %v792, 1
    %v794 = vadd.f32 %v792, %v793
    %v795 = vrot.slane %v786, 4
    %v796 = vadd.f32 %v786, %v795
    %v797 = vrot.slane %v796, 2
    %v798 = vadd.f32 %v796, %v797
    %v799 = vrot.slane %v798, 1
    %v800 = vadd.f32 %v798, %v799
    %v801 = vrot.slane %v787, 4
    %v802 = vadd.f32 %v787, %v801
    %v803 = vrot.slane %v802, 2
    %v804 = vadd.f32 %v802, %v803
    %v805 = vrot.slane %v804, 1
    %v806 = vadd.f32 %v804, %v805
    %v807 = vrot.slane %v788, 4
    %v808 = vadd.f32 %v788, %v807
    %v809 = vrot.slane %v808, 2
    %v810 = vadd.f32 %v808, %v809
    %v811 = vrot.slane %v810, 1
    %v812 = vadd.f32 %v810, %v811
    %v813 = vmul.f32 %v794, %v403
    %v814 = vmul.f32 %v800, %v403
    %v815 = vmul.f32 %v806, %v403
    %v816 = vmul.f32 %v812, %v403
    %v817 = vadd.f32 %v813, 1e-05
    %v818 = vadd.f32 %v814, 1e-05
    %v819 = vadd.f32 %v815, 1e-05
    %v820 = vadd.f32 %v816, 1e-05
    %v821 = vrsqrt.pop %v817
    %v822 = vmul.f32 %v821, %v817
    %v823 = vmul.f32 %v822, %v821
    %v824 = vmul.f32 0.5, %v823
    %v825 = vsub.f32 1.5, %v824
    %v826 = vmul.f32 %v821, %v825
    %vm827 = vweird.f32 %v817
    %vm828 = vweird.f32 %v821
    %vm829 = vmor %vm827, %vm828
    %v830 = vsel %vm829, %v821, %v826
    %v831 = vrsqrt.pop %v818
    %v832 = vmul.f32 %v831, %v818
    %v833 = vmul.f32 %v832, %v831
    %v834 = vmul.f32 0.5, %v833
    %v835 = vsub.f32 1.5, %v834
    %v836 = vmul.f32 %v831, %v835
    %vm837 = vweird.f32 %v818
    %vm838 = vweird.f32 %v831
    %vm839 = vmor %vm837, %vm838
    %v840 = vsel %vm839, %v831, %v836
    %v841 = vrsqrt.pop %v819
    %v842 = vmul.f32 %v841, %v819
    %v843 = vmul.f32 %v842, %v841
    %v844 = vmul.f32 0.5, %v843
    %v845 = vsub.f32 1.5, %v844
    %v846 = vmul.f32 %v841, %v845
    %vm847 = vweird.f32 %v819
    %vm848 = vweird.f32 %v841
    %vm849 = vmor %vm847, %vm848
    %v850 = vsel %vm849, %v841, %v846
    %v851 = vrsqrt.pop %v820
    %v852 = vmul.f32 %v851, %v820
    %v853 = vmul.f32 %v852, %v851
    %v854 = vmul.f32 0.5, %v853
    %v855 = vsub.f32 1.5, %v854
    %v856 = vmul.f32 %v851, %v855
    %vm857 = vweird.f32 %v820
    %vm858 = vweird.f32 %v851
    %vm859 = vmor %vm857, %vm858
    %v860 = vsel %vm859, %v851, %v856
    %v861 = vmul.f32 %v830, %v578
    %v862 = vmul.f32 %v840, %v579
    %v863 = vmul.f32 %v850, %v580
    %v864 = vmul.f32 %v860, %v581
    %v865 = vperm.slane %v861, 3
    %v866 = vperm.slane %v862, 3
    %v867 = vperm.slane %v863, 3
    %v868 = vperm.slane %v864, 3
    %v869 = vmul.f32 %v781, %v865
    %v870 = vmul.f32 %v782, %v866
    %v871 = vmul.f32 %v783, %v867
    %v872 = vmul.f32 %v784, %v868
    %v873 = vperm.slane %v578, 4
    %v874 = vperm.slane %v579, 4
    %v875 = vperm.slane %v580, 4
    %v876 = vperm.slane %v581, 4
    %v877 = vadd.f32 %v869, %v873
    %v878 = vadd.f32 %v870, %v874
    %v879 = vadd.f32 %v871, %v875
    %v880 = vadd.f32 %v872, %v876
    %881 = vst [vmem:[#allocation2 + $0x20] sm:$0xff] %v877
    %882 = vst [vmem:[#allocation2 + $0x28] sm:$0xff] %v878
    %883 = vst [vmem:[#allocation2 + $0x30] sm:$0xff] %v879
    %884 = vst [vmem:[#allocation2 + $0x38] sm:$0xff] %v880
    %s885 = scalar_lea.vmem %s1, 1792
    %v886 = vld [vmem:[%s885] sm:$0xff]
    %v887 = vld [vmem:[%s885 + $0x8] sm:$0xff]
    %v888 = vld [vmem:[%s885 + $0x10] sm:$0xff]
    %v889 = vld [vmem:[%s885 + $0x18] sm:$0xff]
    %v890 = vld [vmem:[%s885 + $0x20] sm:$0xff]
    %v891 = vld [vmem:[%s885 + $0x28] sm:$0xff]
    %v892 = vld [vmem:[%s885 + $0x30] sm:$0xff]
    %v893 = vld [vmem:[%s885 + $0x38] sm:$0xff]
    %v894 = vld [vmem:[%s885 + $0x40] sm:$0xff]
    %v895 = vld [vmem:[%s885 + $0x48] sm:$0xff]
    %v896 = vld [vmem:[%s885 + $0x50] sm:$0xff]
    %v897 = vld [vmem:[%s885 + $0x58] sm:$0xff]
    %v898 = vld [vmem:[%s885 + $0x60] sm:$0xff]
    %v899 = vld [vmem:[%s885 + $0x68] sm:$0xff]
    %v900 = vld [vmem:[%s885 + $0x70] sm:$0xff]
    %v901 = vld [vmem:[%s885 + $0x78] sm:$0xff]
    %v902 = vld [vmem:[%s885 + $0x80] sm:$0xff]
    %v903 = vld [vmem:[%s885 + $0x88] sm:$0xff]
    %v904 = vld [vmem:[%s885 + $0x90] sm:$0xff]
    %v905 = vld [vmem:[%s885 + $0x98] sm:$0xff]
    %v906 = vld [vmem:[%s885 + $0xa0] sm:$0xff]
    %v907 = vld [vmem:[%s885 + $0xa8] sm:$0xff]
    %v908 = vld [vmem:[%s885 + $0xb0] sm:$0xff]
    %v909 = vld [vmem:[%s885 + $0xb8] sm:$0xff]
    %v910 = vld [vmem:[%s885 + $0xc0] sm:$0xff]
    %v911 = vld [vmem:[%s885 + $0xc8] sm:$0xff]
    %v912 = vld [vmem:[%s885 + $0xd0] sm:$0xff]
    %v913 = vld [vmem:[%s885 + $0xd8] sm:$0xff]
    %v914 = vld [vmem:[%s885 + $0xe0] sm:$0xff]
    %v915 = vld [vmem:[%s885 + $0xe8] sm:$0xff]
    %v916 = vld [vmem:[%s885 + $0xf0] sm:$0xff]
    %v917 = vld [vmem:[%s885 + $0xf8] sm:$0xff]
    %v918 = vld [vmem:[%s885 + $0x100] sm:$0xff]
    %v919 = vld [vmem:[%s885 + $0x108] sm:$0xff]
    %v920 = vld [vmem:[%s885 + $0x110] sm:$0xff]
    %v921 = vld [vmem:[%s885 + $0x118] sm:$0xff]
    %v922 = vld [vmem:[%s885 + $0x120] sm:$0xff]
    %v923 = vld [vmem:[%s885 + $0x128] sm:$0xff]
    %v924 = vld [vmem:[%s885 + $0x130] sm:$0xff]
    %v925 = vld [vmem:[%s885 + $0x138] sm:$0xff]
    %v926 = vld [vmem:[%s885 + $0x140] sm:$0xff]
    %v927 = vld [vmem:[%s885 + $0x148] sm:$0xff]
    %v928 = vld [vmem:[%s885 + $0x150] sm:$0xff]
    %v929 = vld [vmem:[%s885 + $0x158] sm:$0xff]
    %v930 = vld [vmem:[%s885 + $0x160] sm:$0xff]
    %v931 = vld [vmem:[%s885 + $0x168] sm:$0xff]
    %v932 = vld [vmem:[%s885 + $0x170] sm:$0xff]
    %v933 = vld [vmem:[%s885 + $0x178] sm:$0xff]
    %v934 = vld [vmem:[%s885 + $0x180] sm:$0xff]
    %v935 = vld [vmem:[%s885 + $0x188] sm:$0xff]
    %v936 = vld [vmem:[%s885 + $0x190] sm:$0xff]
    %v937 = vld [vmem:[%s885 + $0x198] sm:$0xff]
    %v938 = vld [vmem:[%s885 + $0x1a0] sm:$0xff]
    %v939 = vld [vmem:[%s885 + $0x1a8] sm:$0xff]
    %v940 = vld [vmem:[%s885 + $0x1b0] sm:$0xff]
    %v941 = vld [vmem:[%s885 + $0x1b8] sm:$0xff]
    %v942 = vld [vmem:[%s885 + $0x1c0] sm:$0xff]
    %v943 = vld [vmem:[%s885 + $0x1c8] sm:$0xff]
    %v944 = vld [vmem:[%s885 + $0x1d0] sm:$0xff]
    %v945 = vld [vmem:[%s885 + $0x1d8] sm:$0xff]
    %v946 = vld [vmem:[%s885 + $0x1e0] sm:$0xff]
    %v947 = vld [vmem:[%s885 + $0x1e8] sm:$0xff]
    %v948 = vld [vmem:[%s885 + $0x1f0] sm:$0xff]
    %v949 = vld [vmem:[%s885 + $0x1f8] sm:$0xff]
    %s950 = scalar_lea.vmem %s2, 64
    %v951 = vld [vmem:[%s950] sm:$0xff]
    %952 = vmatpush.msra.mxu0 %v901
    %953 = vmatpush.msra.mxu0 %v900
    %954 = vmatpush.msra.mxu0 %v899
    %955 = vmatpush.msra.mxu0 %v898
    %956 = vmatpush.msra.mxu0 %v897
    %957 = vmatpush.msra.mxu0 %v896
    %958 = vmatpush.msra.mxu0 %v895
    %959 = vmatpush.msra.mxu0 %v894
    %960 = vmatpush.msra.mxu0 %v893
    %961 = vmatpush.msra.mxu0 %v892
    %962 = vmatpush.msra.mxu0 %v891
    %963 = vmatpush.msra.mxu0 %v890
    %964 = vmatpush.msra.mxu0 %v889
    %965 = vmatpush.msra.mxu0 %v888
    %966 = vmatpush.msra.mxu0 %v887
    %967 = vmatpush.msra.mxu0 %v886
    %968 = vmatmul.f32.gmra.mxu0 %v877
    %v969 = vpop.f32.mrf.mxu0
    %v970 = vadd.f32 0.0, %v969
    %971 = vdwg.mxu0
    %972 = vmatpush.msra.mxu0 %v917
    %973 = vmatpush.msra.mxu0 %v916
    %974 = vmatpush.msra.mxu0 %v915
    %975 = vmatpush.msra.mxu0 %v914
    %976 = vmatpush.msra.mxu0 %v913
    %977 = vmatpush.msra.mxu0 %v912
    %978 = vmatpush.msra.mxu0 %v911
    %979 = vmatpush.msra.mxu0 %v910
    %980 = vmatpush.msra.mxu0 %v909
    %981 = vmatpush.msra.mxu0 %v908
    %982 = vmatpush.msra.mxu0 %v907
    %983 = vmatpush.msra.mxu0 %v906
    %984 = vmatpush.msra.mxu0 %v905
    %985 = vmatpush.msra.mxu0 %v904
    %986 = vmatpush.msra.mxu0 %v903
    %987 = vmatpush.msra.mxu0 %v902
    %988 = vmatmul.f32.gmra.mxu0 %v878
    %v989 = vpop.f32.mrf.mxu0
    %v990 = vadd.f32 %v970, %v989
    %991 = vdwg.mxu0
    %992 = vmatpush.msra.mxu0 %v933
    %993 = vmatpush.msra.mxu0 %v932
    %994 = vmatpush.msra.mxu0 %v931
    %995 = vmatpush.msra.mxu0 %v930
    %996 = vmatpush.msra.mxu0 %v929
    %997 = vmatpush.msra.mxu0 %v928
    %998 = vmatpush.msra.mxu0 %v927
    %999 = vmatpush.msra.mxu0 %v926
    %1000 = vmatpush.msra.mxu0 %v925
    %1001 = vmatpush.msra.mxu0 %v924
    %1002 = vmatpush.msra.mxu0 %v923
    %1003 = vmatpush.msra.mxu0 %v922
    %1004 = vmatpush.msra.mxu0 %v921
    %1005 = vmatpush.msra.mxu0 %v920
    %1006 = vmatpush.msra.mxu0 %v919
    %1007 = vmatpush.msra.mxu0 %v918
    %1008 = vmatmul.f32.gmra.mxu0 %v879
    %v1009 = vpop.f32.mrf.mxu0
    %v1010 = vadd.f32 %v990, %v1009
    %1011 = vdwg.mxu0
    %1012 = vmatpush.msra.mxu0 %v949
    %1013 = vmatpush.msra.mxu0 %v948
    %1014 = vmatpush.msra.mxu0 %v947
    %1015 = vmatpush.msra.mxu0 %v946
    %1016 = vmatpush.msra.mxu0 %v945
    %1017 = vmatpush.msra.mxu0 %v944
    %1018 = vmatpush.msra.mxu0 %v943
    %1019 = vmatpush.msra.mxu0 %v942
    %1020 = vmatpush.msra.mxu0 %v941
    %1021 = vmatpush.msra.mxu0 %v940
    %1022 = vmatpush.msra.mxu0 %v939
    %1023 = vmatpush.msra.mxu0 %v938
    %1024 = vmatpush.msra.mxu0 %v937
    %1025 = vmatpush.msra.mxu0 %v936
    %1026 = vmatpush.msra.mxu0 %v935
    %1027 = vmatpush.msra.mxu0 %v934
    %1028 = vmatmul.f32.gmra.mxu0 %v880
    %v1029 = vpop.f32.mrf.mxu0
    %v1030 = vadd.f32 %v1010, %v1029
    %1031 = vdwg.mxu0
    %v1032 = vperm.slane %v951, 2
    %v1034 = vsel %vm285, %v1030, 0
    %1036 = vmatpush.msra.mxu0 0.0
    %1037 = vmatpush.msra.mxu0 0.0
    %1038 = vmatpush.msra.mxu0 0.0
    %1039 = vmatpush.msra.mxu0 0.0
    %1040 = vmatpush.msra.mxu0 0.0
    %1041 = vmatpush.msra.mxu0 0.0
    %1042 = vmatpush.msra.mxu0 0.0
    %1043 = vmatpush.msra.mxu0 0.0
    %1044 = vmatpush.msra.mxu0 0.0
    %1045 = vmatpush.msra.mxu0 0.0
    %1046 = vmatpush.msra.mxu0 0.0
    %1047 = vmatpush.msra.mxu0 0.0
    %1048 = vmatpush.msra.mxu0 0.0
    %1049 = vmatpush.msra.mxu0 0.0
    %1050 = vmatpush.msra.mxu0 0.0
    %1051 = vmatpush.msra.mxu0 %v951
    %1052 = vmatmul.f32.gmra.mxu0 %v1034
    %v1053 = vpop.f32.mrf.mxu0
    %v1054 = vadd.f32 %v1032, %v1053
    %1055 = vdwg.mxu0
    %v1056 = vmax.f32 %v1054, 0.0
    %v1057 = vrot.slane %v1056, 4
    %v1058 = vadd.f32 %v1056, %v1057
    %v1059 = vrot.slane %v1058, 2
    %v1060 = vadd.f32 %v1058, %v1059
    %v1061 = vrot.slane %v1060, 1
    %v1062 = vadd.f32 %v1060, %v1061
    %v1063 = vmul.f32 %v1062, %v403
    %v1064 = vsub.f32 %v1056, %v1063
    %v1065 = vmul.f32 %v1064, %v1064
    %v1066 = vrot.slane %v1065, 4
    %v1067 = vadd.f32 %v1065, %v1066
    %v1068 = vrot.slane %v1067, 2
    %v1069 = vadd.f32 %v1067, %v1068
    %v1070 = vrot.slane %v1069, 1
    %v1071 = vadd.f32 %v1069, %v1070
    %v1072 = vmul.f32 %v1071, %v403
    %v1073 = vadd.f32 %v1072, 1e-05
    %v1074 = vrsqrt.pop %v1073
    %v1075 = vmul.f32 %v1074, %v1073
    %v1076 = vmul.f32 %v1075, %v1074
    %v1077 = vmul.f32 0.5, %v1076
    %v1078 = vsub.f32 1.5, %v1077
    %v1079 = vmul.f32 %v1074, %v1078
    %vm1080 = vweird.f32 %v1073
    %vm1081 = vweird.f32 %v1074
    %vm1082 = vmor %vm1080, %vm1081
    %v1083 = vsel %vm1082, %v1074, %v1079
    %v1084 = vmul.f32 %v1083, %v951
    %v1085 = vperm.slane %v1084, 3
    %v1086 = vmul.f32 %v1064, %v1085
    %v1087 = vperm.slane %v951, 4
    %v1088 = vadd.f32 %v1086, %v1087
    %1089 = vst [vmem:[#allocation2 + $0x40] sm:$0xff] %v1088
    %v1090 = vld [vmem:[%s3] sm:$0xff]
    %v1091 = vld [vmem:[%s3 + $0x8] sm:$0xff]
    %v1092 = vld [vmem:[%s3 + $0x10] sm:$0xff]
    %v1093 = vld [vmem:[%s3 + $0x18] sm:$0xff]
    %v1094 = vld [vmem:[%s3 + $0x20] sm:$0xff]
    %v1095 = vld [vmem:[%s3 + $0x28] sm:$0xff]
    %v1096 = vld [vmem:[%s3 + $0x30] sm:$0xff]
    %v1097 = vld [vmem:[%s3 + $0x38] sm:$0xff]
    %v1098 = vld [vmem:[%s3 + $0x40] sm:$0xff]
    %v1099 = vld [vmem:[%s3 + $0x48] sm:$0xff]
    %v1100 = vld [vmem:[%s3 + $0x50] sm:$0xff]
    %v1101 = vld [vmem:[%s3 + $0x58] sm:$0xff]
    %v1102 = vld [vmem:[%s3 + $0x60] sm:$0xff]
    %v1103 = vld [vmem:[%s3 + $0x68] sm:$0xff]
    %v1104 = vld [vmem:[%s3 + $0x70] sm:$0xff]
    %v1105 = vld [vmem:[%s3 + $0x78] sm:$0xff]
    %v1106 = vld [vmem:[%s3 + $0x80] sm:$0x1]
    %v1107 = vperm.slane %v1106, 0
    %1108 = vmatpush.msra.mxu0 %v1105
    %1109 = vmatpush.msra.mxu0 %v1104
    %1110 = vmatpush.msra.mxu0 %v1103
    %1111 = vmatpush.msra.mxu0 %v1102
    %1112 = vmatpush.msra.mxu0 %v1101
    %1113 = vmatpush.msra.mxu0 %v1100
    %1114 = vmatpush.msra.mxu0 %v1099
    %1115 = vmatpush.msra.mxu0 %v1098
    %1116 = vmatpush.msra.mxu0 %v1097
    %1117 = vmatpush.msra.mxu0 %v1096
    %1118 = vmatpush.msra.mxu0 %v1095
    %1119 = vmatpush.msra.mxu0 %v1094
    %1120 = vmatpush.msra.mxu0 %v1093
    %1121 = vmatpush.msra.mxu0 %v1092
    %1122 = vmatpush.msra.mxu0 %v1091
    %1123 = vmatpush.msra.mxu0 %v1090
    %1124 = vmatmul.f32.gmra.mxu0 %v1088
    %v1125 = vpop.f32.mrf.mxu0
    %v1126 = vadd.f32 %v1107, %v1125
    %1127 = vdwg.mxu0
    %v1128 = vmax.f32 %v1126, 0.0
    %1129 = vst [vmem:[#allocation2 + $0x48] sm:$0xff] %v1128
    // Predicated region
    $region18: #{tpu_custom_call.1} parent=1 // pred_check
      _
    $region19: #{tpu_custom_call.1} parent=1 // pred_check_branch
      %1131 = sbr.rel (0) target = $region21
    $region20: #{tpu_custom_call.1} parent=1 // pred_region
      %1133 = vsyncadd [#allocation3], 0
      %s1135 = sshll.u32 [#allocation2], 4
      %s1136 = int_to_ptr.vmem [resolvable:$true] %s1135
      %s1137 = sshll.u32 %s4, 4
      %s1138 = int_to_ptr.hbm [resolvable:$true] %s1137
      %1140 = dma.vmem_to_hbm [thread:$0]  %s1136, 1280, %s1138, [#allocation3]
    $region21: #{tpu_custom_call.1} parent=1 // pred_fallthru
      _
    // Predicated region
    $region22: #{tpu_custom_call.1} parent=1 // pred_check
      _
    $region23: #{tpu_custom_call.1} parent=1 // pred_check_branch
      %1142 = sbr.rel (0) target = $region25
    $region24: #{tpu_custom_call.1} parent=1 // pred_region
      %1144 = dma.done [#allocation3], 1280
    $region25: #{tpu_custom_call.1} parent=1 // pred_fallthru
      _
    %1145 = vsyncpa [#allocation3], 1

</llo_original>
